<compile_context>
chip_gen: v5e
topology: v5e:2x2
jax: 0.10.0
libtpu: 0.0.40
codegen_flags: <defaults>
</compile_context>

<pallas_src>
import jax
import jax.numpy as jnp
from jax.experimental import pallas as pl
from jax.experimental.pallas import tpu as pltpu

BATCH_TILE = 512  # rows per grid step on the tiled (large-batch) path


def linear_kernel(x_ref, w_ref, b_ref, o_ref):
    # y = x @ W_t + b ; W_t is already [F, O] (transposed at init).
    # f32 accumulation on the MXU, stored at the true output width (masked
    # vector stores, but 12.8x fewer HBM bytes than a 128-padded slab).
    acc = jnp.dot(x_ref[...], w_ref[...], preferred_element_type=jnp.float32)
    o_ref[...] = (acc + b_ref[...]).astype(o_ref.dtype)


def prepare_params(weight, bias):
    """One-time relayout of PyTorch Linear params (call once, outside hot path).

    weight: [O, F] -> [F, O] (transposed)
    bias:   [O]    -> [1, O]
    """
    return weight.T, bias.reshape(1, -1)


@jax.jit
def single_layer_forward(x, w_t, b2d):
    """Pallas equivalent of torch.nn.Linear(input_features, 10).forward.

    x:   [B, F] float32
    w_t: [F, O] float32 (from prepare_params)
    b2d: [1, O] float32 (from prepare_params)
    returns [B, O] float32
    """
    B, F = x.shape
    O = w_t.shape[1]
    out_shape = jax.ShapeDtypeStruct((B, O), x.dtype)

    if B <= BATCH_TILE:
        # Small-batch path: no grid, no pipeline — whole arrays live in VMEM,
        # kernel body runs exactly once and writes (B, O) directly (no extra
        # slice kernel / HBM round-trip afterwards).
        return pl.pallas_call(
            linear_kernel,
            out_shape=out_shape,
            in_specs=[
                pl.BlockSpec(memory_space=pltpu.MemorySpace.VMEM),
                pl.BlockSpec(memory_space=pltpu.MemorySpace.VMEM),
                pl.BlockSpec(memory_space=pltpu.MemorySpace.VMEM),
            ],
            out_specs=pl.BlockSpec(memory_space=pltpu.MemorySpace.VMEM),
        )(x, w_t, b2d)

    # Tiled path for any B > BATCH_TILE (including ragged B): pl.cdiv grid,
    # Pallas masks the partial last tile on writeback. Weight + bias stay
    # resident; "parallel" lets Mosaic shard row tiles across both TCs on v7x.
    itemsize = jnp.dtype(x.dtype).itemsize
    cost = pl.CostEstimate(
        flops=2 * B * F * O,
        transcendentals=0,
        bytes_accessed=(B * F + F * O + O + B * O) * itemsize,
    )
    return pl.pallas_call(
        linear_kernel,
        out_shape=out_shape,
        grid=(pl.cdiv(B, BATCH_TILE),),
        in_specs=[
            pl.BlockSpec((BATCH_TILE, F), lambda i: (i, 0)),
            pl.BlockSpec((F, O), lambda i: (0, 0)),
            pl.BlockSpec((1, O), lambda i: (0, 0)),
        ],
        out_specs=pl.BlockSpec((BATCH_TILE, O), lambda i: (i, 0)),
        compiler_params=pltpu.CompilerParams(
            dimension_semantics=("parallel",),
        ),
        cost_estimate=cost,
    )(x, w_t, b2d)


if __name__ == "__main__":
    key = jax.random.PRNGKey(0)
    k_x, k_w, k_b, k_x2 = jax.random.split(key, 4)

    batch = 8
    input_features = 32
    out_features = 10

    x = jax.random.normal(k_x, (batch, input_features), dtype=jnp.float32)
    # Deterministic synthetic parameters (shapes from nn.Linear(input_features, 10))
    bound = 1.0 / (input_features ** 0.5)
    weight = jax.random.uniform(
        k_w, (out_features, input_features), minval=-bound, maxval=bound,
        dtype=jnp.float32)
    bias = jax.random.uniform(
        k_b, (out_features,), minval=-bound, maxval=bound, dtype=jnp.float32)

    # One-time parameter relayout (transpose + reshape) — not in hot path.
    w_t, b2d = prepare_params(weight, bias)
    w_t, b2d = jax.block_until_ready((w_t, b2d))

    # Small-batch (single-invocation) path.
    out = single_layer_forward(x, w_t, b2d)
    out = jax.block_until_ready(out)
    ref = x @ weight.T + bias
    assert out.shape == (batch, out_features)
    assert jnp.allclose(out, ref, atol=1e-5, rtol=1e-5)

    # Tiled path with a ragged batch (exercises the cdiv grid + masked tail).
    big_batch = 1000  # > BATCH_TILE and not a multiple of it
    x_big = jax.random.normal(k_x2, (big_batch, input_features), dtype=jnp.float32)
    out_big = single_layer_forward(x_big, w_t, b2d)
    out_big = jax.block_until_ready(out_big)
    ref_big = x_big @ weight.T + bias
    assert out_big.shape == (big_batch, out_features)
    assert jnp.allclose(out_big, ref_big, atol=1e-5, rtol=1e-5)

    print("KERNEL_OK")
</pallas_src>

<mosaic_0001>
module attributes {stable_mosaic.version = 11 : i64} {
  func.func @linear_kernel(%arg0: memref<8x32xf32, #tpu.memory_space<vmem>>, %arg1: memref<32x10xf32, #tpu.memory_space<vmem>>, %arg2: memref<1x10xf32, #tpu.memory_space<vmem>>, %arg3: memref<8x10xf32, #tpu.memory_space<vmem>>) attributes {dimension_semantics = [], scalar_prefetch = 0 : i64, scratch_operands = 0 : i64, tpu.core_type = #tpu.core_type<tc>} {
    %c0 = arith.constant 0 : index
    %c0_0 = arith.constant 0 : index
    %0 = vector.load %arg0[%c0, %c0_0] : memref<8x32xf32, #tpu.memory_space<vmem>>, vector<8x32xf32>
    %c0_1 = arith.constant 0 : index
    %c0_2 = arith.constant 0 : index
    %1 = vector.load %arg1[%c0_1, %c0_2] : memref<32x10xf32, #tpu.memory_space<vmem>>, vector<32x10xf32>
    %cst = arith.constant dense<0.000000e+00> : vector<8x10xf32>
    %2 = tpu.matmul %0, %1, %cst {dimension_numbers = #tpu.dot_dimension_numbers<[1], [0], [0], [1], [0, 0, 1, 1], [], []>} : vector<8x32xf32>, vector<32x10xf32>, vector<8x10xf32> -> vector<8x10xf32>
    %c0_3 = arith.constant 0 : index
    %c0_4 = arith.constant 0 : index
    %3 = vector.load %arg2[%c0_3, %c0_4] : memref<1x10xf32, #tpu.memory_space<vmem>>, vector<1x10xf32>
    %4 = vector.broadcast %3 : vector<1x10xf32> to vector<8x10xf32>
    %5 = arith.addf %2, %4 : vector<8x10xf32>
    %c0_5 = arith.constant 0 : index
    %c0_6 = arith.constant 0 : index
    %6 = vector.load %arg3[%c0_5, %c0_6] : memref<8x10xf32, #tpu.memory_space<vmem>>, vector<8x10xf32>
    tpu.vector_store %arg3[%c0_5, %c0_6], %5 {strides = array<i32>} : memref<8x10xf32, #tpu.memory_space<vmem>>, vector<8x10xf32>,
    return
  }
}

</mosaic_0001>

<llo_original>
// kernel: single_layer_forward.1
$region0: #{single_layer_forward.1}
  #allocation0 [shape = 'u32[]', space=smem, size = 0x4, offset = 0x4, fixed_abs, tag = 'smem constant byte address 0x4 - core index']
  #allocation1 [shape = 'u32[72,128]{1,0:T(1,128)}', space=vmem, size = 0x9000, scoped, tag = 'internal scratch']
  %s0 = inlined_call_operand.vmem [shape: f32[8,32], index: 0, kind: input, shape index: {}]
  %s1 = inlined_call_operand.vmem [shape: f32[32,10], index: 1, kind: input, shape index: {}]
  %s2 = inlined_call_operand.vmem [shape: f32[1,10], index: 2, kind: input, shape index: {}]
  %s3 = inlined_call_operand.hbm [shape: f32[8,10], index: 3, kind: output, shape index: {}]
  %s4 = sld [smem:[#allocation0]]
  $region22: #{single_layer_forward.1} parent=0
    _
  %s6 = ssub.s32 1, %s4
  %s7 = scalar_select 0, %s6, %s4
  $region1: #{single_layer_forward.1} parent=0
    #allocation2 [shape = 'u8[4096]{0}', space=vmem, size = 0x1000, scoped, tag = 'output window, operand 0, single buffered']
    #allocation3 [shape = 's32[1]{0}', space=sflag, size = 0x4, scoped, tag = 'scoped memory for single_layer_forward.1']
    %8 = vsyncpa [#allocation3], 0
    // Predicated region
    $region2: #{single_layer_forward.1} parent=1 // pred_check
      _
    $region3: #{single_layer_forward.1} parent=1 // pred_check_branch
      %10 = sbr.rel (0) target = $region5
    $region4: #{single_layer_forward.1} parent=1 // pred_region
      _
    $region5: #{single_layer_forward.1} parent=1 // pred_fallthru
      _
    // Predicated region
    $region6: #{single_layer_forward.1} parent=1 // pred_check
      _
    $region7: #{single_layer_forward.1} parent=1 // pred_check_branch
      %12 = sbr.rel (0) target = $region9
    $region8: #{single_layer_forward.1} parent=1 // pred_region
      _
    $region9: #{single_layer_forward.1} parent=1 // pred_fallthru
      _
    // Predicated region
    $region10: #{single_layer_forward.1} parent=1 // pred_check
      _
    $region11: #{single_layer_forward.1} parent=1 // pred_check_branch
      %14 = sbr.rel (0) target = $region13
    $region12: #{single_layer_forward.1} parent=1 // pred_region
      _
    $region13: #{single_layer_forward.1} parent=1 // pred_fallthru
      _
    %v15 = vld [vmem:[%s0] sm:$0xff]
    %v16 = vld [vmem:[%s1] sm:$0xff]
    %v17 = vld [vmem:[%s1 + $0x8] sm:$0xff]
    %v18 = vld [vmem:[%s1 + $0x10] sm:$0xff]
    %v19 = vld [vmem:[%s1 + $0x18] sm:$0xff]
    %v20 = vld [vmem:[%s2] sm:$0x1]
    %v22 = vperm.slane %v20, 0
    %vm24 = vcmask 261120
    %v26 = vsel %vm24, %v15, 0
    %28 = vmatpush.msra.mxu0 0.0
    %29 = vmatpush.msra.mxu0 0.0
    %30 = vmatpush.msra.mxu0 0.0
    %31 = vmatpush.msra.mxu0 0.0
    %32 = vmatpush.msra.mxu0 0.0
    %33 = vmatpush.msra.mxu0 0.0
    %34 = vmatpush.msra.mxu0 0.0
    %35 = vmatpush.msra.mxu0 0.0
    %36 = vmatpush.msra.mxu0 0.0
    %37 = vmatpush.msra.mxu0 0.0
    %38 = vmatpush.msra.mxu0 0.0
    %39 = vmatpush.msra.mxu0 0.0
    %40 = vmatpush.msra.mxu0 %v19
    %41 = vmatpush.msra.mxu0 %v18
    %42 = vmatpush.msra.mxu0 %v17
    %43 = vmatpush.msra.mxu0 %v16
    %44 = vmatmul.f32.gmra.mxu0 %v26
    %v45 = vpop.f32.mrf.mxu0
    %v46 = vadd.f32 %v22, %v45
    %47 = vdwg.mxu0
    %vm48 = vcmask 80896
    %49 = vst.msk [vmem:[#allocation2] sm:$0xff] %vm48, %v46
    // Predicated region
    $region14: #{single_layer_forward.1} parent=1 // pred_check
      _
    $region15: #{single_layer_forward.1} parent=1 // pred_check_branch
      %51 = sbr.rel (0) target = $region17
    $region16: #{single_layer_forward.1} parent=1 // pred_region
      %53 = vsyncadd [#allocation3], 0
      %s55 = sshll.u32 [#allocation2], 4
      %s56 = int_to_ptr.vmem [resolvable:$true] %s55
      %s57 = sshll.u32 %s3, 4
      %s58 = int_to_ptr.hbm [resolvable:$true] %s57
      %60 = dma.vmem_to_hbm [thread:$0]  %s56, 128, %s58, [#allocation3]
    $region17: #{single_layer_forward.1} parent=1 // pred_fallthru
      _
    // Predicated region
    $region18: #{single_layer_forward.1} parent=1 // pred_check
      _
    $region19: #{single_layer_forward.1} parent=1 // pred_check_branch
      %62 = sbr.rel (0) target = $region21
    $region20: #{single_layer_forward.1} parent=1 // pred_region
      %64 = dma.done [#allocation3], 128
    $region21: #{single_layer_forward.1} parent=1 // pred_fallthru
      _
    %65 = vsyncpa [#allocation3], 1

</llo_original>
